<compile_context>
chip_gen: v7x
topology: tpu7x:2x2x1
jax: 0.10.0
libtpu: 0.0.40
codegen_flags: <defaults>
</compile_context>

<pallas_src>
import jax
import jax.numpy as jnp
import numpy as np
from jax.experimental import pallas as pl
from jax.experimental.pallas import tpu as pltpu


def lstm_net_kernel(x_ref, wih_ref, bias_ref, whh_ref, wfc_ref, bfc_ref,
                    y_ref, pre_scr, hs_scr):
    """Full Net forward (LSTM recurrence + FC) in a single kernel invocation.

    x_ref    : (seq, B, 1)   input sequence (input_size == 1)
    wih_ref  : (1, 1, 4H)    W_ih^T, g-gate columns pre-doubled
    bias_ref : (1, 1, 4H)    b_ih + b_hh, g-gate columns pre-doubled
    whh_ref  : (H, 4H)       W_hh^T, g-gate columns pre-doubled
    wfc_ref  : (1, 1, H)     FC weight row
    bfc_ref  : (1,)          FC bias (SMEM scalar)
    y_ref    : (seq, B)      output y[t, b]
    pre_scr  : (seq, B, 4H)  VMEM scratch: precomputed input projection
    hs_scr   : (seq, B, H)   VMEM scratch: hidden-state slab (never hits HBM)
    """
    seq, B, _ = pre_scr.shape
    H = hs_scr.shape[-1]

    # Fused, non-recurrent input projection for ALL timesteps at once (one
    # broadcast FMA over the slab), hoisted off the serial critical path.
    pre_scr[...] = x_ref[...] * wih_ref[...] + bias_ref[...]

    whh = whh_ref[...]  # (H, 4H), loaded once and reused every step

    def step(t, carry):
        h, c = carry
        # gates = pre_gates[t] + h_{t-1} @ W_hh^T   -> (B, 4H)
        gates = pre_scr[t] + jnp.dot(h, whh, preferred_element_type=jnp.float32)

        # Single EUP pass over the full (B, 4H) tile.  The g columns' weights
        # and bias were pre-doubled, so tanh(a_g) = 2*sigmoid(2*a_g) - 1 is
        # recovered with one VPU multiply-add instead of a second EUP pass.
        sig = jax.nn.sigmoid(gates)
        i = sig[:, 0 * H:1 * H]
        f = sig[:, 1 * H:2 * H]
        g = 2.0 * sig[:, 2 * H:3 * H] - 1.0
        o = sig[:, 3 * H:4 * H]

        c_new = f * c + i * g
        h_new = o * jnp.tanh(c_new)

        hs_scr[t] = h_new                   # VMEM-resident, no HBM writeback
        return (h_new, c_new)

    h0 = jnp.zeros((B, H), jnp.float32)
    c0 = jnp.zeros((B, H), jnp.float32)
    jax.lax.fori_loop(0, seq, step, (h0, c0), unroll=min(8, seq))

    # Fused FC epilogue: (seq, B, H) -> (seq, B), all operands VMEM-resident.
    y_ref[...] = jnp.sum(hs_scr[...] * wfc_ref[...], axis=-1) + bfc_ref[0]


def net_forward(x, params):
    """x: (seq_len, batch) float32 -> (seq_len, batch) float32."""
    seq, batch = x.shape
    H = params["w_hh"].shape[1]                                    # W_hh: (4H, H)

    # Pre-double the g-gate (2H:3H) columns of all pre-activation terms so the
    # kernel can compute tanh from the single sigmoid pass (see kernel).
    gate_scale = jnp.concatenate([
        jnp.ones((2 * H,), jnp.float32),
        jnp.full((H,), 2.0, jnp.float32),
        jnp.ones((H,), jnp.float32),
    ])

    whhT = params["w_hh"].T * gate_scale[None, :]                              # (H, 4H)
    wihT = (params["w_ih"].T * gate_scale[None, :]).reshape(1, 1, 4 * H)       # (1,1,4H)
    bias = ((params["b_ih"] + params["b_hh"]) * gate_scale).reshape(1, 1, 4*H) # (1,1,4H)
    wfc = params["w_fc"].reshape(1, 1, H)                                      # (1,1,H)
    bfc = params["b_fc"].reshape(1).astype(jnp.float32)                        # (1,)

    x3 = x.astype(jnp.float32)[:, :, None]                                     # (seq,B,1)

    # Single grid-less invocation; all slabs are a few KiB and VMEM-resident.
    # (If seq*B*4H*4 bytes ever approaches tens of MiB — v7x has 64 MiB VMEM —
    # switch to a seq-chunked grid with h/c carried in scratch.)
    y = pl.pallas_call(
        lstm_net_kernel,
        out_shape=jax.ShapeDtypeStruct((seq, batch), jnp.float32),
        in_specs=[
            pl.BlockSpec(memory_space=pltpu.MemorySpace.VMEM),   # x (seq,B,1)
            pl.BlockSpec(memory_space=pltpu.MemorySpace.VMEM),   # W_ih^T
            pl.BlockSpec(memory_space=pltpu.MemorySpace.VMEM),   # fused bias
            pl.BlockSpec(memory_space=pltpu.MemorySpace.VMEM),   # W_hh^T
            pl.BlockSpec(memory_space=pltpu.MemorySpace.VMEM),   # w_fc
            pl.BlockSpec(memory_space=pltpu.MemorySpace.SMEM),   # b_fc scalar
        ],
        out_specs=pl.BlockSpec(memory_space=pltpu.MemorySpace.VMEM),
        scratch_shapes=[
            pltpu.VMEM((seq, batch, 4 * H), jnp.float32),        # pre_gates
            pltpu.VMEM((seq, batch, H), jnp.float32),            # hidden states
        ],
    )(x3, wihT, bias, whhT, wfc, bfc)
    return y                                                     # (seq, batch)


def net_forward_ref(x, params):
    """Pure-JAX reference (lax.scan LSTM) for correctness checking."""
    H = params["w_hh"].shape[1]
    wihT = params["w_ih"].T
    whhT = params["w_hh"].T
    bias = params["b_ih"] + params["b_hh"]

    def step(carry, x_t):
        h, c = carry
        gates = x_t[:, None] * wihT + h @ whhT + bias
        i = jax.nn.sigmoid(gates[:, 0 * H:1 * H])
        f = jax.nn.sigmoid(gates[:, 1 * H:2 * H])
        g = jnp.tanh(gates[:, 2 * H:3 * H])
        o = jax.nn.sigmoid(gates[:, 3 * H:4 * H])
        c = f * c + i * g
        h = o * jnp.tanh(c)
        return (h, c), h

    batch = x.shape[1]
    h0 = jnp.zeros((batch, H), jnp.float32)
    _, hs = jax.lax.scan(step, (h0, h0), x)
    return (hs @ params["w_fc"].T + params["b_fc"])[:, :, 0]


def init_params(key, input_size, hidden_size):
    """Deterministic init mimicking PyTorch's U(-1/sqrt(H), 1/sqrt(H))."""
    H = hidden_size
    k = 1.0 / np.sqrt(H)
    ks = jax.random.split(key, 6)
    u = lambda kk, shape: jax.random.uniform(kk, shape, jnp.float32, -k, k)
    return {
        "w_ih": u(ks[0], (4 * H, input_size)),
        "w_hh": u(ks[1], (4 * H, H)),
        "b_ih": u(ks[2], (4 * H,)),
        "b_hh": u(ks[3], (4 * H,)),
        "w_fc": u(ks[4], (1, H)),
        "b_fc": u(ks[5], (1,)),
    }


if __name__ == "__main__":
    SEQ, BATCH, HIDDEN = 8, 8, 32
    INPUT_SIZE = 1  # forced by x[:, :, None] in the PyTorch forward

    key = jax.random.PRNGKey(0)
    kx, kp = jax.random.split(key)
    x = jax.random.normal(kx, (SEQ, BATCH), jnp.float32)
    params = init_params(kp, INPUT_SIZE, HIDDEN)

    fwd = jax.jit(net_forward)
    out = jax.block_until_ready(fwd(x, params))
    assert out.shape == (SEQ, BATCH), out.shape

    ref = jax.block_until_ready(net_forward_ref(x, params))
    np.testing.assert_allclose(np.asarray(out), np.asarray(ref),
                               rtol=2e-4, atol=2e-5)

    print("KERNEL_OK")
</pallas_src>

<mosaic_0001>
module attributes {stable_mosaic.version = 11 : i64} {
  func.func @lstm_net_kernel(%arg0: memref<8x8x1xf32, #tpu.memory_space<vmem>>, %arg1: memref<1x1x128xf32, #tpu.memory_space<vmem>>, %arg2: memref<1x1x128xf32, #tpu.memory_space<vmem>>, %arg3: memref<32x128xf32, #tpu.memory_space<vmem>>, %arg4: memref<1x1x32xf32, #tpu.memory_space<vmem>>, %arg5: memref<1xf32, #tpu.memory_space<smem>>, %arg6: memref<8x8xf32, #tpu.memory_space<vmem>>, %arg7: memref<8x8x128xf32, #tpu.memory_space<vmem>>, %arg8: memref<8x8x32xf32, #tpu.memory_space<vmem>>) attributes {dimension_semantics = [], scalar_prefetch = 0 : i64, scratch_operands = 2 : i64, tpu.core_type = #tpu.core_type<tc>} {
    %c0 = arith.constant 0 : index
    %c0_0 = arith.constant 0 : index
    %c0_1 = arith.constant 0 : index
    %0 = vector.load %arg0[%c0, %c0_0, %c0_1] : memref<8x8x1xf32, #tpu.memory_space<vmem>>, vector<8x8x1xf32>
    %c0_2 = arith.constant 0 : index
    %c0_3 = arith.constant 0 : index
    %c0_4 = arith.constant 0 : index
    %1 = vector.load %arg1[%c0_2, %c0_3, %c0_4] : memref<1x1x128xf32, #tpu.memory_space<vmem>>, vector<1x1x128xf32>
    %2 = vector.broadcast %0 : vector<8x8x1xf32> to vector<8x8x128xf32>
    %3 = vector.broadcast %1 : vector<1x1x128xf32> to vector<8x8x128xf32>
    %4 = arith.mulf %2, %3 : vector<8x8x128xf32>
    %c0_5 = arith.constant 0 : index
    %c0_6 = arith.constant 0 : index
    %c0_7 = arith.constant 0 : index
    %5 = vector.load %arg2[%c0_5, %c0_6, %c0_7] : memref<1x1x128xf32, #tpu.memory_space<vmem>>, vector<1x1x128xf32>
    %6 = vector.broadcast %5 : vector<1x1x128xf32> to vector<8x8x128xf32>
    %7 = arith.addf %4, %6 : vector<8x8x128xf32>
    %c0_8 = arith.constant 0 : index
    %c0_9 = arith.constant 0 : index
    %c0_10 = arith.constant 0 : index
    %8 = vector.load %arg7[%c0_8, %c0_9, %c0_10] : memref<8x8x128xf32, #tpu.memory_space<vmem>>, vector<8x8x128xf32>
    tpu.vector_store %arg7[%c0_8, %c0_9, %c0_10], %7 {strides = array<i32>} : memref<8x8x128xf32, #tpu.memory_space<vmem>>, vector<8x8x128xf32>,
    %c0_11 = arith.constant 0 : index
    %c0_12 = arith.constant 0 : index
    %9 = vector.load %arg3[%c0_11, %c0_12] : memref<32x128xf32, #tpu.memory_space<vmem>>, vector<32x128xf32>
    %cst = arith.constant 0.000000e+00 : f32
    %10 = vector.broadcast %cst : f32 to vector<8x32xf32>
    %cst_13 = arith.constant 0.000000e+00 : f32
    %11 = vector.broadcast %cst_13 : f32 to vector<8x32xf32>
    %c0_i32 = arith.constant 0 : i32
    %12 = arith.index_cast %c0_i32 : i32 to index
    %c0_14 = arith.constant 0 : index
    %c0_15 = arith.constant 0 : index
    %13 = vector.load %arg7[%12, %c0_14, %c0_15] : memref<8x8x128xf32, #tpu.memory_space<vmem>>, vector<1x8x128xf32>
    %14 = vector.shape_cast %13 : vector<1x8x128xf32> to vector<8x128xf32>
    %cst_16 = arith.constant dense<0.000000e+00> : vector<8x128xf32>
    %15 = tpu.matmul %10, %9, %cst_16 {dimension_numbers = #tpu.dot_dimension_numbers<[1], [0], [0], [1], [0, 0, 1, 1], [], []>} : vector<8x32xf32>, vector<32x128xf32>, vector<8x128xf32> -> vector<8x128xf32>
    %16 = arith.addf %14, %15 : vector<8x128xf32>
    %17 = arith.negf %16 : vector<8x128xf32>
    %18 = math.exp %17 : vector<8x128xf32>
    %cst_17 = arith.constant 1.000000e+00 : f32
    %19 = vector.broadcast %cst_17 : f32 to vector<8x128xf32>
    %20 = arith.addf %19, %18 : vector<8x128xf32>
    %21 = arith.divf %19, %20 : vector<8x128xf32>
    %22 = vector.extract_strided_slice %21 {offsets = [0, 0], sizes = [8, 32], strides = [1, 1]} : vector<8x128xf32> to vector<8x32xf32>
    %23 = vector.extract_strided_slice %21 {offsets = [0, 32], sizes = [8, 32], strides = [1, 1]} : vector<8x128xf32> to vector<8x32xf32>
    %24 = vector.extract_strided_slice %21 {offsets = [0, 64], sizes = [8, 32], strides = [1, 1]} : vector<8x128xf32> to vector<8x32xf32>
    %cst_18 = arith.constant 2.000000e+00 : f32
    %25 = vector.broadcast %cst_18 : f32 to vector<8x32xf32>
    %26 = arith.mulf %25, %24 : vector<8x32xf32>
    %cst_19 = arith.constant 1.000000e+00 : f32
    %27 = vector.broadcast %cst_19 : f32 to vector<8x32xf32>
    %28 = arith.subf %26, %27 : vector<8x32xf32>
    %29 = vector.extract_strided_slice %21 {offsets = [0, 96], sizes = [8, 32], strides = [1, 1]} : vector<8x128xf32> to vector<8x32xf32>
    %30 = arith.mulf %23, %11 : vector<8x32xf32>
    %31 = arith.mulf %22, %28 : vector<8x32xf32>
    %32 = arith.addf %30, %31 : vector<8x32xf32>
    %33 = math.tanh %32 : vector<8x32xf32>
    %34 = arith.mulf %29, %33 : vector<8x32xf32>
    %35 = arith.index_cast %c0_i32 : i32 to index
    %c0_20 = arith.constant 0 : index
    %c0_21 = arith.constant 0 : index
    %36 = vector.load %arg8[%35, %c0_20, %c0_21] : memref<8x8x32xf32, #tpu.memory_space<vmem>>, vector<1x8x32xf32>
    %37 = vector.shape_cast %36 : vector<1x8x32xf32> to vector<8x32xf32>
    %38 = vector.shape_cast %34 : vector<8x32xf32> to vector<1x8x32xf32>
    tpu.vector_store %arg8[%35, %c0_20, %c0_21], %38 {strides = array<i32>} : memref<8x8x32xf32, #tpu.memory_space<vmem>>, vector<1x8x32xf32>,
    %c1_i32 = arith.constant 1 : i32
    %39 = arith.index_cast %c1_i32 : i32 to index
    %c0_22 = arith.constant 0 : index
    %c0_23 = arith.constant 0 : index
    %40 = vector.load %arg7[%39, %c0_22, %c0_23] : memref<8x8x128xf32, #tpu.memory_space<vmem>>, vector<1x8x128xf32>
    %41 = vector.shape_cast %40 : vector<1x8x128xf32> to vector<8x128xf32>
    %cst_24 = arith.constant dense<0.000000e+00> : vector<8x128xf32>
    %42 = tpu.matmul %34, %9, %cst_24 {dimension_numbers = #tpu.dot_dimension_numbers<[1], [0], [0], [1], [0, 0, 1, 1], [], []>} : vector<8x32xf32>, vector<32x128xf32>, vector<8x128xf32> -> vector<8x128xf32>
    %43 = arith.addf %41, %42 : vector<8x128xf32>
    %44 = arith.negf %43 : vector<8x128xf32>
    %45 = math.exp %44 : vector<8x128xf32>
    %cst_25 = arith.constant 1.000000e+00 : f32
    %46 = vector.broadcast %cst_25 : f32 to vector<8x128xf32>
    %47 = arith.addf %46, %45 : vector<8x128xf32>
    %48 = arith.divf %46, %47 : vector<8x128xf32>
    %49 = vector.extract_strided_slice %48 {offsets = [0, 0], sizes = [8, 32], strides = [1, 1]} : vector<8x128xf32> to vector<8x32xf32>
    %50 = vector.extract_strided_slice %48 {offsets = [0, 32], sizes = [8, 32], strides = [1, 1]} : vector<8x128xf32> to vector<8x32xf32>
    %51 = vector.extract_strided_slice %48 {offsets = [0, 64], sizes = [8, 32], strides = [1, 1]} : vector<8x128xf32> to vector<8x32xf32>
    %cst_26 = arith.constant 2.000000e+00 : f32
    %52 = vector.broadcast %cst_26 : f32 to vector<8x32xf32>
    %53 = arith.mulf %52, %51 : vector<8x32xf32>
    %cst_27 = arith.constant 1.000000e+00 : f32
    %54 = vector.broadcast %cst_27 : f32 to vector<8x32xf32>
    %55 = arith.subf %53, %54 : vector<8x32xf32>
    %56 = vector.extract_strided_slice %48 {offsets = [0, 96], sizes = [8, 32], strides = [1, 1]} : vector<8x128xf32> to vector<8x32xf32>
    %57 = arith.mulf %50, %32 : vector<8x32xf32>
    %58 = arith.mulf %49, %55 : vector<8x32xf32>
    %59 = arith.addf %57, %58 : vector<8x32xf32>
    %60 = math.tanh %59 : vector<8x32xf32>
    %61 = arith.mulf %56, %60 : vector<8x32xf32>
    %62 = arith.index_cast %c1_i32 : i32 to index
    %c0_28 = arith.constant 0 : index
    %c0_29 = arith.constant 0 : index
    %63 = vector.load %arg8[%62, %c0_28, %c0_29] : memref<8x8x32xf32, #tpu.memory_space<vmem>>, vector<1x8x32xf32>
    %64 = vector.shape_cast %63 : vector<1x8x32xf32> to vector<8x32xf32>
    %65 = vector.shape_cast %61 : vector<8x32xf32> to vector<1x8x32xf32>
    tpu.vector_store %arg8[%62, %c0_28, %c0_29], %65 {strides = array<i32>} : memref<8x8x32xf32, #tpu.memory_space<vmem>>, vector<1x8x32xf32>,
    %c2_i32 = arith.constant 2 : i32
    %66 = arith.index_cast %c2_i32 : i32 to index
    %c0_30 = arith.constant 0 : index
    %c0_31 = arith.constant 0 : index
    %67 = vector.load %arg7[%66, %c0_30, %c0_31] : memref<8x8x128xf32, #tpu.memory_space<vmem>>, vector<1x8x128xf32>
    %68 = vector.shape_cast %67 : vector<1x8x128xf32> to vector<8x128xf32>
    %cst_32 = arith.constant dense<0.000000e+00> : vector<8x128xf32>
    %69 = tpu.matmul %61, %9, %cst_32 {dimension_numbers = #tpu.dot_dimension_numbers<[1], [0], [0], [1], [0, 0, 1, 1], [], []>} : vector<8x32xf32>, vector<32x128xf32>, vector<8x128xf32> -> vector<8x128xf32>
    %70 = arith.addf %68, %69 : vector<8x128xf32>
    %71 = arith.negf %70 : vector<8x128xf32>
    %72 = math.exp %71 : vector<8x128xf32>
    %cst_33 = arith.constant 1.000000e+00 : f32
    %73 = vector.broadcast %cst_33 : f32 to vector<8x128xf32>
    %74 = arith.addf %73, %72 : vector<8x128xf32>
    %75 = arith.divf %73, %74 : vector<8x128xf32>
    %76 = vector.extract_strided_slice %75 {offsets = [0, 0], sizes = [8, 32], strides = [1, 1]} : vector<8x128xf32> to vector<8x32xf32>
    %77 = vector.extract_strided_slice %75 {offsets = [0, 32], sizes = [8, 32], strides = [1, 1]} : vector<8x128xf32> to vector<8x32xf32>
    %78 = vector.extract_strided_slice %75 {offsets = [0, 64], sizes = [8, 32], strides = [1, 1]} : vector<8x128xf32> to vector<8x32xf32>
    %cst_34 = arith.constant 2.000000e+00 : f32
    %79 = vector.broadcast %cst_34 : f32 to vector<8x32xf32>
    %80 = arith.mulf %79, %78 : vector<8x32xf32>
    %cst_35 = arith.constant 1.000000e+00 : f32
    %81 = vector.broadcast %cst_35 : f32 to vector<8x32xf32>
    %82 = arith.subf %80, %81 : vector<8x32xf32>
    %83 = vector.extract_strided_slice %75 {offsets = [0, 96], sizes = [8, 32], strides = [1, 1]} : vector<8x128xf32> to vector<8x32xf32>
    %84 = arith.mulf %77, %59 : vector<8x32xf32>
    %85 = arith.mulf %76, %82 : vector<8x32xf32>
    %86 = arith.addf %84, %85 : vector<8x32xf32>
    %87 = math.tanh %86 : vector<8x32xf32>
    %88 = arith.mulf %83, %87 : vector<8x32xf32>
    %89 = arith.index_cast %c2_i32 : i32 to index
    %c0_36 = arith.constant 0 : index
    %c0_37 = arith.constant 0 : index
    %90 = vector.load %arg8[%89, %c0_36, %c0_37] : memref<8x8x32xf32, #tpu.memory_space<vmem>>, vector<1x8x32xf32>
    %91 = vector.shape_cast %90 : vector<1x8x32xf32> to vector<8x32xf32>
    %92 = vector.shape_cast %88 : vector<8x32xf32> to vector<1x8x32xf32>
    tpu.vector_store %arg8[%89, %c0_36, %c0_37], %92 {strides = array<i32>} : memref<8x8x32xf32, #tpu.memory_space<vmem>>, vector<1x8x32xf32>,
    %c3_i32 = arith.constant 3 : i32
    %93 = arith.index_cast %c3_i32 : i32 to index
    %c0_38 = arith.constant 0 : index
    %c0_39 = arith.constant 0 : index
    %94 = vector.load %arg7[%93, %c0_38, %c0_39] : memref<8x8x128xf32, #tpu.memory_space<vmem>>, vector<1x8x128xf32>
    %95 = vector.shape_cast %94 : vector<1x8x128xf32> to vector<8x128xf32>
    %cst_40 = arith.constant dense<0.000000e+00> : vector<8x128xf32>
    %96 = tpu.matmul %88, %9, %cst_40 {dimension_numbers = #tpu.dot_dimension_numbers<[1], [0], [0], [1], [0, 0, 1, 1], [], []>} : vector<8x32xf32>, vector<32x128xf32>, vector<8x128xf32> -> vector<8x128xf32>
    %97 = arith.addf %95, %96 : vector<8x128xf32>
    %98 = arith.negf %97 : vector<8x128xf32>
    %99 = math.exp %98 : vector<8x128xf32>
    %cst_41 = arith.constant 1.000000e+00 : f32
    %100 = vector.broadcast %cst_41 : f32 to vector<8x128xf32>
    %101 = arith.addf %100, %99 : vector<8x128xf32>
    %102 = arith.divf %100, %101 : vector<8x128xf32>
    %103 = vector.extract_strided_slice %102 {offsets = [0, 0], sizes = [8, 32], strides = [1, 1]} : vector<8x128xf32> to vector<8x32xf32>
    %104 = vector.extract_strided_slice %102 {offsets = [0, 32], sizes = [8, 32], strides = [1, 1]} : vector<8x128xf32> to vector<8x32xf32>
    %105 = vector.extract_strided_slice %102 {offsets = [0, 64], sizes = [8, 32], strides = [1, 1]} : vector<8x128xf32> to vector<8x32xf32>
    %cst_42 = arith.constant 2.000000e+00 : f32
    %106 = vector.broadcast %cst_42 : f32 to vector<8x32xf32>
    %107 = arith.mulf %106, %105 : vector<8x32xf32>
    %cst_43 = arith.constant 1.000000e+00 : f32
    %108 = vector.broadcast %cst_43 : f32 to vector<8x32xf32>
    %109 = arith.subf %107, %108 : vector<8x32xf32>
    %110 = vector.extract_strided_slice %102 {offsets = [0, 96], sizes = [8, 32], strides = [1, 1]} : vector<8x128xf32> to vector<8x32xf32>
    %111 = arith.mulf %104, %86 : vector<8x32xf32>
    %112 = arith.mulf %103, %109 : vector<8x32xf32>
    %113 = arith.addf %111, %112 : vector<8x32xf32>
    %114 = math.tanh %113 : vector<8x32xf32>
    %115 = arith.mulf %110, %114 : vector<8x32xf32>
    %116 = arith.index_cast %c3_i32 : i32 to index
    %c0_44 = arith.constant 0 : index
    %c0_45 = arith.constant 0 : index
    %117 = vector.load %arg8[%116, %c0_44, %c0_45] : memref<8x8x32xf32, #tpu.memory_space<vmem>>, vector<1x8x32xf32>
    %118 = vector.shape_cast %117 : vector<1x8x32xf32> to vector<8x32xf32>
    %119 = vector.shape_cast %115 : vector<8x32xf32> to vector<1x8x32xf32>
    tpu.vector_store %arg8[%116, %c0_44, %c0_45], %119 {strides = array<i32>} : memref<8x8x32xf32, #tpu.memory_space<vmem>>, vector<1x8x32xf32>,
    %c4_i32 = arith.constant 4 : i32
    %120 = arith.index_cast %c4_i32 : i32 to index
    %c0_46 = arith.constant 0 : index
    %c0_47 = arith.constant 0 : index
    %121 = vector.load %arg7[%120, %c0_46, %c0_47] : memref<8x8x128xf32, #tpu.memory_space<vmem>>, vector<1x8x128xf32>
    %122 = vector.shape_cast %121 : vector<1x8x128xf32> to vector<8x128xf32>
    %cst_48 = arith.constant dense<0.000000e+00> : vector<8x128xf32>
    %123 = tpu.matmul %115, %9, %cst_48 {dimension_numbers = #tpu.dot_dimension_numbers<[1], [0], [0], [1], [0, 0, 1, 1], [], []>} : vector<8x32xf32>, vector<32x128xf32>, vector<8x128xf32> -> vector<8x128xf32>
    %124 = arith.addf %122, %123 : vector<8x128xf32>
    %125 = arith.negf %124 : vector<8x128xf32>
    %126 = math.exp %125 : vector<8x128xf32>
    %cst_49 = arith.constant 1.000000e+00 : f32
    %127 = vector.broadcast %cst_49 : f32 to vector<8x128xf32>
    %128 = arith.addf %127, %126 : vector<8x128xf32>
    %129 = arith.divf %127, %128 : vector<8x128xf32>
    %130 = vector.extract_strided_slice %129 {offsets = [0, 0], sizes = [8, 32], strides = [1, 1]} : vector<8x128xf32> to vector<8x32xf32>
    %131 = vector.extract_strided_slice %129 {offsets = [0, 32], sizes = [8, 32], strides = [1, 1]} : vector<8x128xf32> to vector<8x32xf32>
    %132 = vector.extract_strided_slice %129 {offsets = [0, 64], sizes = [8, 32], strides = [1, 1]} : vector<8x128xf32> to vector<8x32xf32>
    %cst_50 = arith.constant 2.000000e+00 : f32
    %133 = vector.broadcast %cst_50 : f32 to vector<8x32xf32>
    %134 = arith.mulf %133, %132 : vector<8x32xf32>
    %cst_51 = arith.constant 1.000000e+00 : f32
    %135 = vector.broadcast %cst_51 : f32 to vector<8x32xf32>
    %136 = arith.subf %134, %135 : vector<8x32xf32>
    %137 = vector.extract_strided_slice %129 {offsets = [0, 96], sizes = [8, 32], strides = [1, 1]} : vector<8x128xf32> to vector<8x32xf32>
    %138 = arith.mulf %131, %113 : vector<8x32xf32>
    %139 = arith.mulf %130, %136 : vector<8x32xf32>
    %140 = arith.addf %138, %139 : vector<8x32xf32>
    %141 = math.tanh %140 : vector<8x32xf32>
    %142 = arith.mulf %137, %141 : vector<8x32xf32>
    %143 = arith.index_cast %c4_i32 : i32 to index
    %c0_52 = arith.constant 0 : index
    %c0_53 = arith.constant 0 : index
    %144 = vector.load %arg8[%143, %c0_52, %c0_53] : memref<8x8x32xf32, #tpu.memory_space<vmem>>, vector<1x8x32xf32>
    %145 = vector.shape_cast %144 : vector<1x8x32xf32> to vector<8x32xf32>
    %146 = vector.shape_cast %142 : vector<8x32xf32> to vector<1x8x32xf32>
    tpu.vector_store %arg8[%143, %c0_52, %c0_53], %146 {strides = array<i32>} : memref<8x8x32xf32, #tpu.memory_space<vmem>>, vector<1x8x32xf32>,
    %c5_i32 = arith.constant 5 : i32
    %147 = arith.index_cast %c5_i32 : i32 to index
    %c0_54 = arith.constant 0 : index
    %c0_55 = arith.constant 0 : index
    %148 = vector.load %arg7[%147, %c0_54, %c0_55] : memref<8x8x128xf32, #tpu.memory_space<vmem>>, vector<1x8x128xf32>
    %149 = vector.shape_cast %148 : vector<1x8x128xf32> to vector<8x128xf32>
    %cst_56 = arith.constant dense<0.000000e+00> : vector<8x128xf32>
    %150 = tpu.matmul %142, %9, %cst_56 {dimension_numbers = #tpu.dot_dimension_numbers<[1], [0], [0], [1], [0, 0, 1, 1], [], []>} : vector<8x32xf32>, vector<32x128xf32>, vector<8x128xf32> -> vector<8x128xf32>
    %151 = arith.addf %149, %150 : vector<8x128xf32>
    %152 = arith.negf %151 : vector<8x128xf32>
    %153 = math.exp %152 : vector<8x128xf32>
    %cst_57 = arith.constant 1.000000e+00 : f32
    %154 = vector.broadcast %cst_57 : f32 to vector<8x128xf32>
    %155 = arith.addf %154, %153 : vector<8x128xf32>
    %156 = arith.divf %154, %155 : vector<8x128xf32>
    %157 = vector.extract_strided_slice %156 {offsets = [0, 0], sizes = [8, 32], strides = [1, 1]} : vector<8x128xf32> to vector<8x32xf32>
    %158 = vector.extract_strided_slice %156 {offsets = [0, 32], sizes = [8, 32], strides = [1, 1]} : vector<8x128xf32> to vector<8x32xf32>
    %159 = vector.extract_strided_slice %156 {offsets = [0, 64], sizes = [8, 32], strides = [1, 1]} : vector<8x128xf32> to vector<8x32xf32>
    %cst_58 = arith.constant 2.000000e+00 : f32
    %160 = vector.broadcast %cst_58 : f32 to vector<8x32xf32>
    %161 = arith.mulf %160, %159 : vector<8x32xf32>
    %cst_59 = arith.constant 1.000000e+00 : f32
    %162 = vector.broadcast %cst_59 : f32 to vector<8x32xf32>
    %163 = arith.subf %161, %162 : vector<8x32xf32>
    %164 = vector.extract_strided_slice %156 {offsets = [0, 96], sizes = [8, 32], strides = [1, 1]} : vector<8x128xf32> to vector<8x32xf32>
    %165 = arith.mulf %158, %140 : vector<8x32xf32>
    %166 = arith.mulf %157, %163 : vector<8x32xf32>
    %167 = arith.addf %165, %166 : vector<8x32xf32>
    %168 = math.tanh %167 : vector<8x32xf32>
    %169 = arith.mulf %164, %168 : vector<8x32xf32>
    %170 = arith.index_cast %c5_i32 : i32 to index
    %c0_60 = arith.constant 0 : index
    %c0_61 = arith.constant 0 : index
    %171 = vector.load %arg8[%170, %c0_60, %c0_61] : memref<8x8x32xf32, #tpu.memory_space<vmem>>, vector<1x8x32xf32>
    %172 = vector.shape_cast %171 : vector<1x8x32xf32> to vector<8x32xf32>
    %173 = vector.shape_cast %169 : vector<8x32xf32> to vector<1x8x32xf32>
    tpu.vector_store %arg8[%170, %c0_60, %c0_61], %173 {strides = array<i32>} : memref<8x8x32xf32, #tpu.memory_space<vmem>>, vector<1x8x32xf32>,
    %c6_i32 = arith.constant 6 : i32
    %174 = arith.index_cast %c6_i32 : i32 to index
    %c0_62 = arith.constant 0 : index
    %c0_63 = arith.constant 0 : index
    %175 = vector.load %arg7[%174, %c0_62, %c0_63] : memref<8x8x128xf32, #tpu.memory_space<vmem>>, vector<1x8x128xf32>
    %176 = vector.shape_cast %175 : vector<1x8x128xf32> to vector<8x128xf32>
    %cst_64 = arith.constant dense<0.000000e+00> : vector<8x128xf32>
    %177 = tpu.matmul %169, %9, %cst_64 {dimension_numbers = #tpu.dot_dimension_numbers<[1], [0], [0], [1], [0, 0, 1, 1], [], []>} : vector<8x32xf32>, vector<32x128xf32>, vector<8x128xf32> -> vector<8x128xf32>
    %178 = arith.addf %176, %177 : vector<8x128xf32>
    %179 = arith.negf %178 : vector<8x128xf32>
    %180 = math.exp %179 : vector<8x128xf32>
    %cst_65 = arith.constant 1.000000e+00 : f32
    %181 = vector.broadcast %cst_65 : f32 to vector<8x128xf32>
    %182 = arith.addf %181, %180 : vector<8x128xf32>
    %183 = arith.divf %181, %182 : vector<8x128xf32>
    %184 = vector.extract_strided_slice %183 {offsets = [0, 0], sizes = [8, 32], strides = [1, 1]} : vector<8x128xf32> to vector<8x32xf32>
    %185 = vector.extract_strided_slice %183 {offsets = [0, 32], sizes = [8, 32], strides = [1, 1]} : vector<8x128xf32> to vector<8x32xf32>
    %186 = vector.extract_strided_slice %183 {offsets = [0, 64], sizes = [8, 32], strides = [1, 1]} : vector<8x128xf32> to vector<8x32xf32>
    %cst_66 = arith.constant 2.000000e+00 : f32
    %187 = vector.broadcast %cst_66 : f32 to vector<8x32xf32>
    %188 = arith.mulf %187, %186 : vector<8x32xf32>
    %cst_67 = arith.constant 1.000000e+00 : f32
    %189 = vector.broadcast %cst_67 : f32 to vector<8x32xf32>
    %190 = arith.subf %188, %189 : vector<8x32xf32>
    %191 = vector.extract_strided_slice %183 {offsets = [0, 96], sizes = [8, 32], strides = [1, 1]} : vector<8x128xf32> to vector<8x32xf32>
    %192 = arith.mulf %185, %167 : vector<8x32xf32>
    %193 = arith.mulf %184, %190 : vector<8x32xf32>
    %194 = arith.addf %192, %193 : vector<8x32xf32>
    %195 = math.tanh %194 : vector<8x32xf32>
    %196 = arith.mulf %191, %195 : vector<8x32xf32>
    %197 = arith.index_cast %c6_i32 : i32 to index
    %c0_68 = arith.constant 0 : index
    %c0_69 = arith.constant 0 : index
    %198 = vector.load %arg8[%197, %c0_68, %c0_69] : memref<8x8x32xf32, #tpu.memory_space<vmem>>, vector<1x8x32xf32>
    %199 = vector.shape_cast %198 : vector<1x8x32xf32> to vector<8x32xf32>
    %200 = vector.shape_cast %196 : vector<8x32xf32> to vector<1x8x32xf32>
    tpu.vector_store %arg8[%197, %c0_68, %c0_69], %200 {strides = array<i32>} : memref<8x8x32xf32, #tpu.memory_space<vmem>>, vector<1x8x32xf32>,
    %c7_i32 = arith.constant 7 : i32
    %201 = arith.index_cast %c7_i32 : i32 to index
    %c0_70 = arith.constant 0 : index
    %c0_71 = arith.constant 0 : index
    %202 = vector.load %arg7[%201, %c0_70, %c0_71] : memref<8x8x128xf32, #tpu.memory_space<vmem>>, vector<1x8x128xf32>
    %203 = vector.shape_cast %202 : vector<1x8x128xf32> to vector<8x128xf32>
    %cst_72 = arith.constant dense<0.000000e+00> : vector<8x128xf32>
    %204 = tpu.matmul %196, %9, %cst_72 {dimension_numbers = #tpu.dot_dimension_numbers<[1], [0], [0], [1], [0, 0, 1, 1], [], []>} : vector<8x32xf32>, vector<32x128xf32>, vector<8x128xf32> -> vector<8x128xf32>
    %205 = arith.addf %203, %204 : vector<8x128xf32>
    %206 = arith.negf %205 : vector<8x128xf32>
    %207 = math.exp %206 : vector<8x128xf32>
    %cst_73 = arith.constant 1.000000e+00 : f32
    %208 = vector.broadcast %cst_73 : f32 to vector<8x128xf32>
    %209 = arith.addf %208, %207 : vector<8x128xf32>
    %210 = arith.divf %208, %209 : vector<8x128xf32>
    %211 = vector.extract_strided_slice %210 {offsets = [0, 0], sizes = [8, 32], strides = [1, 1]} : vector<8x128xf32> to vector<8x32xf32>
    %212 = vector.extract_strided_slice %210 {offsets = [0, 32], sizes = [8, 32], strides = [1, 1]} : vector<8x128xf32> to vector<8x32xf32>
    %213 = vector.extract_strided_slice %210 {offsets = [0, 64], sizes = [8, 32], strides = [1, 1]} : vector<8x128xf32> to vector<8x32xf32>
    %cst_74 = arith.constant 2.000000e+00 : f32
    %214 = vector.broadcast %cst_74 : f32 to vector<8x32xf32>
    %215 = arith.mulf %214, %213 : vector<8x32xf32>
    %cst_75 = arith.constant 1.000000e+00 : f32
    %216 = vector.broadcast %cst_75 : f32 to vector<8x32xf32>
    %217 = arith.subf %215, %216 : vector<8x32xf32>
    %218 = vector.extract_strided_slice %210 {offsets = [0, 96], sizes = [8, 32], strides = [1, 1]} : vector<8x128xf32> to vector<8x32xf32>
    %219 = arith.mulf %212, %194 : vector<8x32xf32>
    %220 = arith.mulf %211, %217 : vector<8x32xf32>
    %221 = arith.addf %219, %220 : vector<8x32xf32>
    %222 = math.tanh %221 : vector<8x32xf32>
    %223 = arith.mulf %218, %222 : vector<8x32xf32>
    %224 = arith.index_cast %c7_i32 : i32 to index
    %c0_76 = arith.constant 0 : index
    %c0_77 = arith.constant 0 : index
    %225 = vector.load %arg8[%224, %c0_76, %c0_77] : memref<8x8x32xf32, #tpu.memory_space<vmem>>, vector<1x8x32xf32>
    %226 = vector.shape_cast %225 : vector<1x8x32xf32> to vector<8x32xf32>
    %227 = vector.shape_cast %223 : vector<8x32xf32> to vector<1x8x32xf32>
    tpu.vector_store %arg8[%224, %c0_76, %c0_77], %227 {strides = array<i32>} : memref<8x8x32xf32, #tpu.memory_space<vmem>>, vector<1x8x32xf32>,
    %c8_i32 = arith.constant 8 : i32
    %c0_78 = arith.constant 0 : index
    %c0_79 = arith.constant 0 : index
    %c0_80 = arith.constant 0 : index
    %228 = vector.load %arg8[%c0_78, %c0_79, %c0_80] : memref<8x8x32xf32, #tpu.memory_space<vmem>>, vector<8x8x32xf32>
    %c0_81 = arith.constant 0 : index
    %c0_82 = arith.constant 0 : index
    %c0_83 = arith.constant 0 : index
    %229 = vector.load %arg4[%c0_81, %c0_82, %c0_83] : memref<1x1x32xf32, #tpu.memory_space<vmem>>, vector<1x1x32xf32>
    %230 = vector.broadcast %229 : vector<1x1x32xf32> to vector<8x8x32xf32>
    %231 = arith.mulf %228, %230 : vector<8x8x32xf32>
    %cst_84 = arith.constant dense<0.000000e+00> : vector<8x8xf32>
    %232 = vector.multi_reduction <add>, %231, %cst_84 [2] : vector<8x8x32xf32> to vector<8x8xf32>
    %c0_85 = arith.constant 0 : index
    %233 = memref.load %arg5[%c0_85] : memref<1xf32, #tpu.memory_space<smem>>
    %234 = vector.broadcast %233 : f32 to vector<8x8xf32>
    %235 = arith.addf %232, %234 : vector<8x8xf32>
    %c0_86 = arith.constant 0 : index
    %c0_87 = arith.constant 0 : index
    %236 = vector.load %arg6[%c0_86, %c0_87] : memref<8x8xf32, #tpu.memory_space<vmem>>, vector<8x8xf32>
    tpu.vector_store %arg6[%c0_86, %c0_87], %235 {strides = array<i32>} : memref<8x8xf32, #tpu.memory_space<vmem>>, vector<8x8xf32>,
    return
  }
}

</mosaic_0001>

<llo_original>
// kernel: net_forward.1
$region0: #{net_forward.1}
  #allocation0 [shape = 'u32[]', space=smem, size = 0x4, offset = 0x4, fixed_abs, tag = 'smem constant byte address 0x4 - core index']
  #allocation1 [shape = 'u32[144,128]{1,0:T(1,128)}', space=vmem, size = 0x12000, scoped, tag = 'internal scratch']
  #allocation2 [shape = 'f32[8,8,128]{2,1,0:T(8,128)}', space=vmem, size = 0x8000, scoped, tag = 'scratch operand']
  #allocation3 [shape = 'f32[8,8,32]{2,1,0:T(8,128)}', space=vmem, size = 0x8000, scoped, tag = 'scratch operand']
  #allocation4 [shape = 'f32[1]{0:T(128)S(6)}', space=smem, size = 0x200, scoped, tag = 'scoped memory for net_forward.1']
  %s0 = inlined_call_operand.vmem [shape: f32[8,8,1], index: 0, kind: input, shape index: {}]
  %s1 = inlined_call_operand.vmem [shape: f32[1,1,128], index: 1, kind: input, shape index: {}]
  %s2 = inlined_call_operand.vmem [shape: f32[1,1,128], index: 2, kind: input, shape index: {}]
  %s3 = inlined_call_operand.vmem [shape: f32[32,128], index: 3, kind: input, shape index: {}]
  %s4 = inlined_call_operand.vmem [shape: f32[1,1,32], index: 4, kind: input, shape index: {}]
  %s5 = inlined_call_operand.<no memory space> [shape: f32[1], index: 5, kind: input, shape index: {}]
  %s6 = inlined_call_operand.hbm [shape: f32[8,8], index: 6, kind: output, shape index: {}]
  %s7 = sld [smem:[#allocation0]]
  $region34: #{net_forward.1} parent=0
    _
  %s9 = ssub.s32 1, %s7
  %s10 = scalar_select 0, %s9, %s7
  %11 = sst [smem:[#allocation4]] %s5
  $region1: #{net_forward.1} parent=0
    #allocation5 [shape = 'u8[4096]{0}', space=vmem, size = 0x1000, scoped, tag = 'output window, operand 0, single buffered']
    #allocation6 [shape = 's32[1]{0}', space=sflag, size = 0x4, scoped, tag = 'scoped memory for net_forward.1']
    %12 = vsyncpa [#allocation6], 0
    // Predicated region
    $region2: #{net_forward.1} parent=1 // pred_check
      _
    $region3: #{net_forward.1} parent=1 // pred_check_branch
      %14 = sbr.rel (0) target = $region5
    $region4: #{net_forward.1} parent=1 // pred_region
      _
    $region5: #{net_forward.1} parent=1 // pred_fallthru
      _
    // Predicated region
    $region6: #{net_forward.1} parent=1 // pred_check
      _
    $region7: #{net_forward.1} parent=1 // pred_check_branch
      %16 = sbr.rel (0) target = $region9
    $region8: #{net_forward.1} parent=1 // pred_region
      _
    $region9: #{net_forward.1} parent=1 // pred_fallthru
      _
    // Predicated region
    $region10: #{net_forward.1} parent=1 // pred_check
      _
    $region11: #{net_forward.1} parent=1 // pred_check_branch
      %18 = sbr.rel (0) target = $region13
    $region12: #{net_forward.1} parent=1 // pred_region
      _
    $region13: #{net_forward.1} parent=1 // pred_fallthru
      _
    // Predicated region
    $region14: #{net_forward.1} parent=1 // pred_check
      _
    $region15: #{net_forward.1} parent=1 // pred_check_branch
      %20 = sbr.rel (0) target = $region17
    $region16: #{net_forward.1} parent=1 // pred_region
      _
    $region17: #{net_forward.1} parent=1 // pred_fallthru
      _
    // Predicated region
    $region18: #{net_forward.1} parent=1 // pred_check
      _
    $region19: #{net_forward.1} parent=1 // pred_check_branch
      %22 = sbr.rel (0) target = $region21
    $region20: #{net_forward.1} parent=1 // pred_region
      _
    $region21: #{net_forward.1} parent=1 // pred_fallthru
      _
    // Predicated region
    $region22: #{net_forward.1} parent=1 // pred_check
      _
    $region23: #{net_forward.1} parent=1 // pred_check_branch
      %24 = sbr.rel (0) target = $region25
    $region24: #{net_forward.1} parent=1 // pred_region
      _
    $region25: #{net_forward.1} parent=1 // pred_fallthru
      _
    %v25 = vld [vmem:[%s0] sm:$0xff]
    %v26 = vld [vmem:[%s0 + $0x8] sm:$0xff]
    %v27 = vld [vmem:[%s0 + $0x10] sm:$0xff]
    %v28 = vld [vmem:[%s0 + $0x18] sm:$0xff]
    %v29 = vld [vmem:[%s0 + $0x20] sm:$0xff]
    %v30 = vld [vmem:[%s0 + $0x28] sm:$0xff]
    %v31 = vld [vmem:[%s0 + $0x30] sm:$0xff]
    %v32 = vld [vmem:[%s0 + $0x38] sm:$0xff]
    %v33 = vld [vmem:[%s1] sm:$0x1]
    %35 = vset.pattern.permute.xlu0 0
    %36 = vperm.xlu0 %35, %v25
    %v37 = vpop.permute.xlu0 %36
    %40 = vset.pattern.permute.xlu0 0
    %41 = vperm.xlu0 %40, %v26
    %v42 = vpop.permute.xlu0 %41
    %45 = vset.pattern.permute.xlu0 0
    %46 = vperm.xlu0 %45, %v27
    %v47 = vpop.permute.xlu0 %46
    %50 = vset.pattern.permute.xlu0 0
    %51 = vperm.xlu0 %50, %v28
    %v52 = vpop.permute.xlu0 %51
    %55 = vset.pattern.permute.xlu0 0
    %56 = vperm.xlu0 %55, %v29
    %v57 = vpop.permute.xlu0 %56
    %60 = vset.pattern.permute.xlu0 0
    %61 = vperm.xlu0 %60, %v30
    %v62 = vpop.permute.xlu0 %61
    %65 = vset.pattern.permute.xlu0 0
    %66 = vperm.xlu0 %65, %v31
    %v67 = vpop.permute.xlu0 %66
    %70 = vset.pattern.permute.xlu0 0
    %71 = vperm.xlu0 %70, %v32
    %v72 = vpop.permute.xlu0 %71
    %v75 = vlaneseq
    %v76 = vshrl.u32 %v75, 7
    %v77 = vsub.s32 0, %v76
    %v78 = vrot.slane %v33, %v77
    %v80 = vmul.f32 %v37, %v78
    %v81 = vmul.f32 %v42, %v78
    %v82 = vmul.f32 %v47, %v78
    %v83 = vmul.f32 %v52, %v78
    %v84 = vmul.f32 %v57, %v78
    %v85 = vmul.f32 %v62, %v78
    %v86 = vmul.f32 %v67, %v78
    %v87 = vmul.f32 %v72, %v78
    %v88 = vld [vmem:[%s2] sm:$0x1]
    %v90 = vlaneseq
    %v91 = vshrl.u32 %v90, 7
    %v92 = vsub.s32 0, %v91
    %v93 = vrot.slane %v88, %v92
    %v95 = vadd.f32 %v80, %v93
    %v96 = vadd.f32 %v81, %v93
    %v97 = vadd.f32 %v82, %v93
    %v98 = vadd.f32 %v83, %v93
    %v99 = vadd.f32 %v84, %v93
    %v100 = vadd.f32 %v85, %v93
    %v101 = vadd.f32 %v86, %v93
    %v102 = vadd.f32 %v87, %v93
    %103 = vst [vmem:[#allocation2] sm:$0xff] %v95
    %104 = vst [vmem:[#allocation2 + $0x8] sm:$0xff] %v96
    %105 = vst [vmem:[#allocation2 + $0x10] sm:$0xff] %v97
    %106 = vst [vmem:[#allocation2 + $0x18] sm:$0xff] %v98
    %107 = vst [vmem:[#allocation2 + $0x20] sm:$0xff] %v99
    %108 = vst [vmem:[#allocation2 + $0x28] sm:$0xff] %v100
    %109 = vst [vmem:[#allocation2 + $0x30] sm:$0xff] %v101
    %110 = vst [vmem:[#allocation2 + $0x38] sm:$0xff] %v102
    %v111 = vld [vmem:[%s3] sm:$0xff]
    %v112 = vld [vmem:[%s3 + $0x8] sm:$0xff]
    %v113 = vld [vmem:[%s3 + $0x10] sm:$0xff]
    %v114 = vld [vmem:[%s3 + $0x18] sm:$0xff]
    %v115 = vld [vmem:[#allocation2] sm:$0xff]
    %vm116 = vcmask 261120
    %v118 = vsel %vm116, 0.0, 0
    %120 = vmatprep.subr.mxu0 0.0
    %121 = vmatpush1.msra.mxu0 %v111
    %122 = vmatprep.subr.mxu0 0.0
    %123 = vmatpush1.msra.mxu0 %v112
    %124 = vmatprep.subr.mxu0 0.0
    %125 = vmatpush1.msra.mxu0 %v113
    %126 = vmatprep.subr.mxu0 0.0
    %127 = vmatpush1.msra.mxu0 %v114
    %128 = vmatprep.subr.mxu0 0.0
    %129 = vmatpush1.msra.mxu0 0.0
    %130 = vmatprep.subr.mxu0 0.0
    %131 = vmatpush1.msra.mxu0 0.0
    %132 = vmatprep.subr.mxu0 0.0
    %133 = vmatpush1.msra.mxu0 0.0
    %134 = vmatprep.subr.mxu0 0.0
    %135 = vmatpush1.msra.mxu0 0.0
    %136 = vmatprep.subr.mxu0 0.0
    %137 = vmatpush1.msra.mxu0 0.0
    %138 = vmatprep.subr.mxu0 0.0
    %139 = vmatpush1.msra.mxu0 0.0
    %140 = vmatprep.subr.mxu0 0.0
    %141 = vmatpush1.msra.mxu0 0.0
    %142 = vmatprep.subr.mxu0 0.0
    %143 = vmatpush1.msra.mxu0 0.0
    %144 = vmatprep.subr.mxu0 0.0
    %145 = vmatpush1.msra.mxu0 0.0
    %146 = vmatprep.subr.mxu0 0.0
    %147 = vmatpush1.msra.mxu0 0.0
    %148 = vmatprep.subr.mxu0 0.0
    %149 = vmatpush1.msra.mxu0 0.0
    %150 = vmatprep.subr.mxu0 0.0
    %151 = vmatpush1.msra.mxu0 0.0
    %152 = vmatprep.subr.mxu0 0.0
    %153 = vmatpush1.msra.mxu0 0.0
    %154 = vmatprep.subr.mxu0 0.0
    %155 = vmatpush1.msra.mxu0 0.0
    %156 = vmatprep.subr.mxu0 0.0
    %157 = vmatpush1.msra.mxu0 0.0
    %158 = vmatprep.subr.mxu0 0.0
    %159 = vmatpush1.msra.mxu0 0.0
    %160 = vmatprep.subr.mxu0 0.0
    %161 = vmatpush1.msra.mxu0 0.0
    %162 = vmatprep.subr.mxu0 0.0
    %163 = vmatpush1.msra.mxu0 0.0
    %164 = vmatprep.subr.mxu0 0.0
    %165 = vmatpush1.msra.mxu0 0.0
    %166 = vmatprep.subr.mxu0 0.0
    %167 = vmatpush1.msra.mxu0 0.0
    %168 = vmatprep.subr.mxu0 0.0
    %169 = vmatpush1.msra.mxu0 0.0
    %170 = vmatprep.subr.mxu0 0.0
    %171 = vmatpush1.msra.mxu0 0.0
    %172 = vmatprep.subr.mxu0 0.0
    %173 = vmatpush1.msra.mxu0 0.0
    %174 = vmatprep.subr.mxu0 0.0
    %175 = vmatpush1.msra.mxu0 0.0
    %176 = vmatprep.subr.mxu0 0.0
    %177 = vmatpush1.msra.mxu0 0.0
    %178 = vmatprep.subr.mxu0 0.0
    %179 = vmatpush1.msra.mxu0 0.0
    %180 = vmatprep.subr.mxu0 0.0
    %181 = vmatpush1.msra.mxu0 0.0
    %182 = vmatprep.subr.mxu0 0.0
    %183 = vmatpush1.msra.mxu0 0.0
    %184 = vmatprep.mubr.f32.mxu0 0.0
    %185 = vmatmul.mubr.f32.gmra.mrb[0].mxu0 %v118
    %v186 = vpop.f32.mrb[0].mxu0
    %v187 = vadd.f32 0.0, %v186
    %v188 = vpop.f32.mrb[0].mxu0
    %189 = vdwg.mxu0
    %v190 = vadd.f32 %v115, %v187
    %v191 = vxor.u32 %v190, 2147483648
    %v192 = vmul.f32 %v191, 1.442695
    %v193 = vpow.pop %v192
    %v194 = vadd.f32 %v193, 1.0
    %v195 = vrcp.pop %v194
    %v196 = vmul.f32 1.0, %v195
    %v197 = vmul.f32 %v196, 2.0
    %v198 = vsub.f32 %v197, 1.0
    %v199 = vmul.f32 %v196, 0.0
    %201 = vrot.lane.b32.xlu0 %v198, 64
    %v202 = vpop.permute.xlu0 %201
    %v204 = vmul.f32 %v196, %v202
    %206 = vrot.lane.b32.xlu0 %v204, 32
    %v207 = vpop.permute.xlu0 %206
    %v209 = vadd.f32 %v199, %v207
    %v210 = vtanh.pop %v209
    %212 = vrot.lane.b32.xlu0 %v210, 64
    %v213 = vpop.permute.xlu0 %212
    %v215 = vmul.f32 %v196, %v213
    %217 = vrot.lane.b32.xlu0 %v215, 32
    %v218 = vpop.permute.xlu0 %217
    %220 = vst.msk [vmem:[#allocation3] sm:$0xff] %vm116, %v218
    %s221 = scalar_lea.vmem [#allocation2], 8
    %v222 = vld [vmem:[%s221] sm:$0xff]
    %v223 = vsel %vm116, %v218, 0
    %225 = vmatprep.subr.mxu0 0.0
    %226 = vmatpush1.msra.mxu0 %v111
    %227 = vmatprep.subr.mxu0 0.0
    %228 = vmatpush1.msra.mxu0 %v112
    %229 = vmatprep.subr.mxu0 0.0
    %230 = vmatpush1.msra.mxu0 %v113
    %231 = vmatprep.subr.mxu0 0.0
    %232 = vmatpush1.msra.mxu0 %v114
    %233 = vmatprep.subr.mxu0 0.0
    %234 = vmatpush1.msra.mxu0 0.0
    %235 = vmatprep.subr.mxu0 0.0
    %236 = vmatpush1.msra.mxu0 0.0
    %237 = vmatprep.subr.mxu0 0.0
    %238 = vmatpush1.msra.mxu0 0.0
    %239 = vmatprep.subr.mxu0 0.0
    %240 = vmatpush1.msra.mxu0 0.0
    %241 = vmatprep.subr.mxu0 0.0
    %242 = vmatpush1.msra.mxu0 0.0
    %243 = vmatprep.subr.mxu0 0.0
    %244 = vmatpush1.msra.mxu0 0.0
    %245 = vmatprep.subr.mxu0 0.0
    %246 = vmatpush1.msra.mxu0 0.0
    %247 = vmatprep.subr.mxu0 0.0
    %248 = vmatpush1.msra.mxu0 0.0
    %249 = vmatprep.subr.mxu0 0.0
    %250 = vmatpush1.msra.mxu0 0.0
    %251 = vmatprep.subr.mxu0 0.0
    %252 = vmatpush1.msra.mxu0 0.0
    %253 = vmatprep.subr.mxu0 0.0
    %254 = vmatpush1.msra.mxu0 0.0
    %255 = vmatprep.subr.mxu0 0.0
    %256 = vmatpush1.msra.mxu0 0.0
    %257 = vmatprep.subr.mxu0 0.0
    %258 = vmatpush1.msra.mxu0 0.0
    %259 = vmatprep.subr.mxu0 0.0
    %260 = vmatpush1.msra.mxu0 0.0
    %261 = vmatprep.subr.mxu0 0.0
    %262 = vmatpush1.msra.mxu0 0.0
    %263 = vmatprep.subr.mxu0 0.0
    %264 = vmatpush1.msra.mxu0 0.0
    %265 = vmatprep.subr.mxu0 0.0
    %266 = vmatpush1.msra.mxu0 0.0
    %267 = vmatprep.subr.mxu0 0.0
    %268 = vmatpush1.msra.mxu0 0.0
    %269 = vmatprep.subr.mxu0 0.0
    %270 = vmatpush1.msra.mxu0 0.0
    %271 = vmatprep.subr.mxu0 0.0
    %272 = vmatpush1.msra.mxu0 0.0
    %273 = vmatprep.subr.mxu0 0.0
    %274 = vmatpush1.msra.mxu0 0.0
    %275 = vmatprep.subr.mxu0 0.0
    %276 = vmatpush1.msra.mxu0 0.0
    %277 = vmatprep.subr.mxu0 0.0
    %278 = vmatpush1.msra.mxu0 0.0
    %279 = vmatprep.subr.mxu0 0.0
    %280 = vmatpush1.msra.mxu0 0.0
    %281 = vmatprep.subr.mxu0 0.0
    %282 = vmatpush1.msra.mxu0 0.0
    %283 = vmatprep.subr.mxu0 0.0
    %284 = vmatpush1.msra.mxu0 0.0
    %285 = vmatprep.subr.mxu0 0.0
    %286 = vmatpush1.msra.mxu0 0.0
    %287 = vmatprep.subr.mxu0 0.0
    %288 = vmatpush1.msra.mxu0 0.0
    %289 = vmatprep.mubr.f32.mxu0 0.0
    %290 = vmatmul.mubr.f32.gmra.mrb[0].mxu0 %v223
    %v291 = vpop.f32.mrb[0].mxu0
    %v292 = vadd.f32 0.0, %v291
    %v293 = vpop.f32.mrb[0].mxu0
    %294 = vdwg.mxu0
    %v295 = vadd.f32 %v222, %v292
    %v296 = vxor.u32 %v295, 2147483648
    %v297 = vmul.f32 %v296, 1.442695
    %v298 = vpow.pop %v297
    %v299 = vadd.f32 %v298, 1.0
    %v300 = vrcp.pop %v299
    %v301 = vmul.f32 1.0, %v300
    %v302 = vmul.f32 %v301, 2.0
    %v303 = vsub.f32 %v302, 1.0
    %v304 = vmul.f32 %v301, %v209
    %306 = vrot.lane.b32.xlu0 %v303, 64
    %v307 = vpop.permute.xlu0 %306
    %v309 = vmul.f32 %v301, %v307
    %311 = vrot.lane.b32.xlu0 %v309, 32
    %v312 = vpop.permute.xlu0 %311
    %v314 = vadd.f32 %v304, %v312
    %v315 = vtanh.pop %v314
    %317 = vrot.lane.b32.xlu0 %v315, 64
    %v318 = vpop.permute.xlu0 %317
    %v320 = vmul.f32 %v301, %v318
    %322 = vrot.lane.b32.xlu0 %v320, 32
    %v323 = vpop.permute.xlu0 %322
    %s325 = scalar_lea.vmem [#allocation3], 8
    %326 = vst.msk [vmem:[%s325] sm:$0xff] %vm116, %v323
    %s327 = scalar_lea.vmem [#allocation2], 16
    %v328 = vld [vmem:[%s327] sm:$0xff]
    %v329 = vsel %vm116, %v323, 0
    %331 = vmatprep.subr.mxu0 0.0
    %332 = vmatpush1.msra.mxu0 %v111
    %333 = vmatprep.subr.mxu0 0.0
    %334 = vmatpush1.msra.mxu0 %v112
    %335 = vmatprep.subr.mxu0 0.0
    %336 = vmatpush1.msra.mxu0 %v113
    %337 = vmatprep.subr.mxu0 0.0
    %338 = vmatpush1.msra.mxu0 %v114
    %339 = vmatprep.subr.mxu0 0.0
    %340 = vmatpush1.msra.mxu0 0.0
    %341 = vmatprep.subr.mxu0 0.0
    %342 = vmatpush1.msra.mxu0 0.0
    %343 = vmatprep.subr.mxu0 0.0
    %344 = vmatpush1.msra.mxu0 0.0
    %345 = vmatprep.subr.mxu0 0.0
    %346 = vmatpush1.msra.mxu0 0.0
    %347 = vmatprep.subr.mxu0 0.0
    %348 = vmatpush1.msra.mxu0 0.0
    %349 = vmatprep.subr.mxu0 0.0
    %350 = vmatpush1.msra.mxu0 0.0
    %351 = vmatprep.subr.mxu0 0.0
    %352 = vmatpush1.msra.mxu0 0.0
    %353 = vmatprep.subr.mxu0 0.0
    %354 = vmatpush1.msra.mxu0 0.0
    %355 = vmatprep.subr.mxu0 0.0
    %356 = vmatpush1.msra.mxu0 0.0
    %357 = vmatprep.subr.mxu0 0.0
    %358 = vmatpush1.msra.mxu0 0.0
    %359 = vmatprep.subr.mxu0 0.0
    %360 = vmatpush1.msra.mxu0 0.0
    %361 = vmatprep.subr.mxu0 0.0
    %362 = vmatpush1.msra.mxu0 0.0
    %363 = vmatprep.subr.mxu0 0.0
    %364 = vmatpush1.msra.mxu0 0.0
    %365 = vmatprep.subr.mxu0 0.0
    %366 = vmatpush1.msra.mxu0 0.0
    %367 = vmatprep.subr.mxu0 0.0
    %368 = vmatpush1.msra.mxu0 0.0
    %369 = vmatprep.subr.mxu0 0.0
    %370 = vmatpush1.msra.mxu0 0.0
    %371 = vmatprep.subr.mxu0 0.0
    %372 = vmatpush1.msra.mxu0 0.0
    %373 = vmatprep.subr.mxu0 0.0
    %374 = vmatpush1.msra.mxu0 0.0
    %375 = vmatprep.subr.mxu0 0.0
    %376 = vmatpush1.msra.mxu0 0.0
    %377 = vmatprep.subr.mxu0 0.0
    %378 = vmatpush1.msra.mxu0 0.0
    %379 = vmatprep.subr.mxu0 0.0
    %380 = vmatpush1.msra.mxu0 0.0
    %381 = vmatprep.subr.mxu0 0.0
    %382 = vmatpush1.msra.mxu0 0.0
    %383 = vmatprep.subr.mxu0 0.0
    %384 = vmatpush1.msra.mxu0 0.0
    %385 = vmatprep.subr.mxu0 0.0
    %386 = vmatpush1.msra.mxu0 0.0
    %387 = vmatprep.subr.mxu0 0.0
    %388 = vmatpush1.msra.mxu0 0.0
    %389 = vmatprep.subr.mxu0 0.0
    %390 = vmatpush1.msra.mxu0 0.0
    %391 = vmatprep.subr.mxu0 0.0
    %392 = vmatpush1.msra.mxu0 0.0
    %393 = vmatprep.subr.mxu0 0.0
    %394 = vmatpush1.msra.mxu0 0.0
    %395 = vmatprep.mubr.f32.mxu0 0.0
    %396 = vmatmul.mubr.f32.gmra.mrb[0].mxu0 %v329
    %v397 = vpop.f32.mrb[0].mxu0
    %v398 = vadd.f32 0.0, %v397
    %v399 = vpop.f32.mrb[0].mxu0
    %400 = vdwg.mxu0
    %v401 = vadd.f32 %v328, %v398
    %v402 = vxor.u32 %v401, 2147483648
    %v403 = vmul.f32 %v402, 1.442695
    %v404 = vpow.pop %v403
    %v405 = vadd.f32 %v404, 1.0
    %v406 = vrcp.pop %v405
    %v407 = vmul.f32 1.0, %v406
    %v408 = vmul.f32 %v407, 2.0
    %v409 = vsub.f32 %v408, 1.0
    %v410 = vmul.f32 %v407, %v314
    %412 = vrot.lane.b32.xlu0 %v409, 64
    %v413 = vpop.permute.xlu0 %412
    %v415 = vmul.f32 %v407, %v413
    %417 = vrot.lane.b32.xlu0 %v415, 32
    %v418 = vpop.permute.xlu0 %417
    %v420 = vadd.f32 %v410, %v418
    %v421 = vtanh.pop %v420
    %423 = vrot.lane.b32.xlu0 %v421, 64
    %v424 = vpop.permute.xlu0 %423
    %v426 = vmul.f32 %v407, %v424
    %428 = vrot.lane.b32.xlu0 %v426, 32
    %v429 = vpop.permute.xlu0 %428
    %s431 = scalar_lea.vmem [#allocation3], 16
    %432 = vst.msk [vmem:[%s431] sm:$0xff] %vm116, %v429
    %s433 = scalar_lea.vmem [#allocation2], 24
    %v434 = vld [vmem:[%s433] sm:$0xff]
    %v435 = vsel %vm116, %v429, 0
    %437 = vmatprep.subr.mxu0 0.0
    %438 = vmatpush1.msra.mxu0 %v111
    %439 = vmatprep.subr.mxu0 0.0
    %440 = vmatpush1.msra.mxu0 %v112
    %441 = vmatprep.subr.mxu0 0.0
    %442 = vmatpush1.msra.mxu0 %v113
    %443 = vmatprep.subr.mxu0 0.0
    %444 = vmatpush1.msra.mxu0 %v114
    %445 = vmatprep.subr.mxu0 0.0
    %446 = vmatpush1.msra.mxu0 0.0
    %447 = vmatprep.subr.mxu0 0.0
    %448 = vmatpush1.msra.mxu0 0.0
    %449 = vmatprep.subr.mxu0 0.0
    %450 = vmatpush1.msra.mxu0 0.0
    %451 = vmatprep.subr.mxu0 0.0
    %452 = vmatpush1.msra.mxu0 0.0
    %453 = vmatprep.subr.mxu0 0.0
    %454 = vmatpush1.msra.mxu0 0.0
    %455 = vmatprep.subr.mxu0 0.0
    %456 = vmatpush1.msra.mxu0 0.0
    %457 = vmatprep.subr.mxu0 0.0
    %458 = vmatpush1.msra.mxu0 0.0
    %459 = vmatprep.subr.mxu0 0.0
    %460 = vmatpush1.msra.mxu0 0.0
    %461 = vmatprep.subr.mxu0 0.0
    %462 = vmatpush1.msra.mxu0 0.0
    %463 = vmatprep.subr.mxu0 0.0
    %464 = vmatpush1.msra.mxu0 0.0
    %465 = vmatprep.subr.mxu0 0.0
    %466 = vmatpush1.msra.mxu0 0.0
    %467 = vmatprep.subr.mxu0 0.0
    %468 = vmatpush1.msra.mxu0 0.0
    %469 = vmatprep.subr.mxu0 0.0
    %470 = vmatpush1.msra.mxu0 0.0
    %471 = vmatprep.subr.mxu0 0.0
    %472 = vmatpush1.msra.mxu0 0.0
    %473 = vmatprep.subr.mxu0 0.0
    %474 = vmatpush1.msra.mxu0 0.0
    %475 = vmatprep.subr.mxu0 0.0
    %476 = vmatpush1.msra.mxu0 0.0
    %477 = vmatprep.subr.mxu0 0.0
    %478 = vmatpush1.msra.mxu0 0.0
    %479 = vmatprep.subr.mxu0 0.0
    %480 = vmatpush1.msra.mxu0 0.0
    %481 = vmatprep.subr.mxu0 0.0
    %482 = vmatpush1.msra.mxu0 0.0
    %483 = vmatprep.subr.mxu0 0.0
    %484 = vmatpush1.msra.mxu0 0.0
    %485 = vmatprep.subr.mxu0 0.0
    %486 = vmatpush1.msra.mxu0 0.0
    %487 = vmatprep.subr.mxu0 0.0
    %488 = vmatpush1.msra.mxu0 0.0
    %489 = vmatprep.subr.mxu0 0.0
    %490 = vmatpush1.msra.mxu0 0.0
    %491 = vmatprep.subr.mxu0 0.0
    %492 = vmatpush1.msra.mxu0 0.0
    %493 = vmatprep.subr.mxu0 0.0
    %494 = vmatpush1.msra.mxu0 0.0
    %495 = vmatprep.subr.mxu0 0.0
    %496 = vmatpush1.msra.mxu0 0.0
    %497 = vmatprep.subr.mxu0 0.0
    %498 = vmatpush1.msra.mxu0 0.0
    %499 = vmatprep.subr.mxu0 0.0
    %500 = vmatpush1.msra.mxu0 0.0
    %501 = vmatprep.mubr.f32.mxu0 0.0
    %502 = vmatmul.mubr.f32.gmra.mrb[0].mxu0 %v435
    %v503 = vpop.f32.mrb[0].mxu0
    %v504 = vadd.f32 0.0, %v503
    %v505 = vpop.f32.mrb[0].mxu0
    %506 = vdwg.mxu0
    %v507 = vadd.f32 %v434, %v504
    %v508 = vxor.u32 %v507, 2147483648
    %v509 = vmul.f32 %v508, 1.442695
    %v510 = vpow.pop %v509
    %v511 = vadd.f32 %v510, 1.0
    %v512 = vrcp.pop %v511
    %v513 = vmul.f32 1.0, %v512
    %v514 = vmul.f32 %v513, 2.0
    %v515 = vsub.f32 %v514, 1.0
    %v516 = vmul.f32 %v513, %v420
    %518 = vrot.lane.b32.xlu0 %v515, 64
    %v519 = vpop.permute.xlu0 %518
    %v521 = vmul.f32 %v513, %v519
    %523 = vrot.lane.b32.xlu0 %v521, 32
    %v524 = vpop.permute.xlu0 %523
    %v526 = vadd.f32 %v516, %v524
    %v527 = vtanh.pop %v526
    %529 = vrot.lane.b32.xlu0 %v527, 64
    %v530 = vpop.permute.xlu0 %529
    %v532 = vmul.f32 %v513, %v530
    %534 = vrot.lane.b32.xlu0 %v532, 32
    %v535 = vpop.permute.xlu0 %534
    %s537 = scalar_lea.vmem [#allocation3], 24
    %538 = vst.msk [vmem:[%s537] sm:$0xff] %vm116, %v535
    %s539 = scalar_lea.vmem [#allocation2], 32
    %v540 = vld [vmem:[%s539] sm:$0xff]
    %v541 = vsel %vm116, %v535, 0
    %543 = vmatprep.subr.mxu0 0.0
    %544 = vmatpush1.msra.mxu0 %v111
    %545 = vmatprep.subr.mxu0 0.0
    %546 = vmatpush1.msra.mxu0 %v112
    %547 = vmatprep.subr.mxu0 0.0
    %548 = vmatpush1.msra.mxu0 %v113
    %549 = vmatprep.subr.mxu0 0.0
    %550 = vmatpush1.msra.mxu0 %v114
    %551 = vmatprep.subr.mxu0 0.0
    %552 = vmatpush1.msra.mxu0 0.0
    %553 = vmatprep.subr.mxu0 0.0
    %554 = vmatpush1.msra.mxu0 0.0
    %555 = vmatprep.subr.mxu0 0.0
    %556 = vmatpush1.msra.mxu0 0.0
    %557 = vmatprep.subr.mxu0 0.0
    %558 = vmatpush1.msra.mxu0 0.0
    %559 = vmatprep.subr.mxu0 0.0
    %560 = vmatpush1.msra.mxu0 0.0
    %561 = vmatprep.subr.mxu0 0.0
    %562 = vmatpush1.msra.mxu0 0.0
    %563 = vmatprep.subr.mxu0 0.0
    %564 = vmatpush1.msra.mxu0 0.0
    %565 = vmatprep.subr.mxu0 0.0
    %566 = vmatpush1.msra.mxu0 0.0
    %567 = vmatprep.subr.mxu0 0.0
    %568 = vmatpush1.msra.mxu0 0.0
    %569 = vmatprep.subr.mxu0 0.0
    %570 = vmatpush1.msra.mxu0 0.0
    %571 = vmatprep.subr.mxu0 0.0
    %572 = vmatpush1.msra.mxu0 0.0
    %573 = vmatprep.subr.mxu0 0.0
    %574 = vmatpush1.msra.mxu0 0.0
    %575 = vmatprep.subr.mxu0 0.0
    %576 = vmatpush1.msra.mxu0 0.0
    %577 = vmatprep.subr.mxu0 0.0
    %578 = vmatpush1.msra.mxu0 0.0
    %579 = vmatprep.subr.mxu0 0.0
    %580 = vmatpush1.msra.mxu0 0.0
    %581 = vmatprep.subr.mxu0 0.0
    %582 = vmatpush1.msra.mxu0 0.0
    %583 = vmatprep.subr.mxu0 0.0
    %584 = vmatpush1.msra.mxu0 0.0
    %585 = vmatprep.subr.mxu0 0.0
    %586 = vmatpush1.msra.mxu0 0.0
    %587 = vmatprep.subr.mxu0 0.0
    %588 = vmatpush1.msra.mxu0 0.0
    %589 = vmatprep.subr.mxu0 0.0
    %590 = vmatpush1.msra.mxu0 0.0
    %591 = vmatprep.subr.mxu0 0.0
    %592 = vmatpush1.msra.mxu0 0.0
    %593 = vmatprep.subr.mxu0 0.0
    %594 = vmatpush1.msra.mxu0 0.0
    %595 = vmatprep.subr.mxu0 0.0
    %596 = vmatpush1.msra.mxu0 0.0
    %597 = vmatprep.subr.mxu0 0.0
    %598 = vmatpush1.msra.mxu0 0.0
    %599 = vmatprep.subr.mxu0 0.0
    %600 = vmatpush1.msra.mxu0 0.0
    %601 = vmatprep.subr.mxu0 0.0
    %602 = vmatpush1.msra.mxu0 0.0
    %603 = vmatprep.subr.mxu0 0.0
    %604 = vmatpush1.msra.mxu0 0.0
    %605 = vmatprep.subr.mxu0 0.0
    %606 = vmatpush1.msra.mxu0 0.0
    %607 = vmatprep.mubr.f32.mxu0 0.0
    %608 = vmatmul.mubr.f32.gmra.mrb[0].mxu0 %v541
    %v609 = vpop.f32.mrb[0].mxu0
    %v610 = vadd.f32 0.0, %v609
    %v611 = vpop.f32.mrb[0].mxu0
    %612 = vdwg.mxu0
    %v613 = vadd.f32 %v540, %v610
    %v614 = vxor.u32 %v613, 2147483648
    %v615 = vmul.f32 %v614, 1.442695
    %v616 = vpow.pop %v615
    %v617 = vadd.f32 %v616, 1.0
    %v618 = vrcp.pop %v617
    %v619 = vmul.f32 1.0, %v618
    %v620 = vmul.f32 %v619, 2.0
    %v621 = vsub.f32 %v620, 1.0
    %v622 = vmul.f32 %v619, %v526
    %624 = vrot.lane.b32.xlu0 %v621, 64
    %v625 = vpop.permute.xlu0 %624
    %v627 = vmul.f32 %v619, %v625
    %629 = vrot.lane.b32.xlu0 %v627, 32
    %v630 = vpop.permute.xlu0 %629
    %v632 = vadd.f32 %v622, %v630
    %v633 = vtanh.pop %v632
    %635 = vrot.lane.b32.xlu0 %v633, 64
    %v636 = vpop.permute.xlu0 %635
    %v638 = vmul.f32 %v619, %v636
    %640 = vrot.lane.b32.xlu0 %v638, 32
    %v641 = vpop.permute.xlu0 %640
    %s643 = scalar_lea.vmem [#allocation3], 32
    %644 = vst.msk [vmem:[%s643] sm:$0xff] %vm116, %v641
    %s645 = scalar_lea.vmem [#allocation2], 40
    %v646 = vld [vmem:[%s645] sm:$0xff]
    %v647 = vsel %vm116, %v641, 0
    %649 = vmatprep.subr.mxu0 0.0
    %650 = vmatpush1.msra.mxu0 %v111
    %651 = vmatprep.subr.mxu0 0.0
    %652 = vmatpush1.msra.mxu0 %v112
    %653 = vmatprep.subr.mxu0 0.0
    %654 = vmatpush1.msra.mxu0 %v113
    %655 = vmatprep.subr.mxu0 0.0
    %656 = vmatpush1.msra.mxu0 %v114
    %657 = vmatprep.subr.mxu0 0.0
    %658 = vmatpush1.msra.mxu0 0.0
    %659 = vmatprep.subr.mxu0 0.0
    %660 = vmatpush1.msra.mxu0 0.0
    %661 = vmatprep.subr.mxu0 0.0
    %662 = vmatpush1.msra.mxu0 0.0
    %663 = vmatprep.subr.mxu0 0.0
    %664 = vmatpush1.msra.mxu0 0.0
    %665 = vmatprep.subr.mxu0 0.0
    %666 = vmatpush1.msra.mxu0 0.0
    %667 = vmatprep.subr.mxu0 0.0
    %668 = vmatpush1.msra.mxu0 0.0
    %669 = vmatprep.subr.mxu0 0.0
    %670 = vmatpush1.msra.mxu0 0.0
    %671 = vmatprep.subr.mxu0 0.0
    %672 = vmatpush1.msra.mxu0 0.0
    %673 = vmatprep.subr.mxu0 0.0
    %674 = vmatpush1.msra.mxu0 0.0
    %675 = vmatprep.subr.mxu0 0.0
    %676 = vmatpush1.msra.mxu0 0.0
    %677 = vmatprep.subr.mxu0 0.0
    %678 = vmatpush1.msra.mxu0 0.0
    %679 = vmatprep.subr.mxu0 0.0
    %680 = vmatpush1.msra.mxu0 0.0
    %681 = vmatprep.subr.mxu0 0.0
    %682 = vmatpush1.msra.mxu0 0.0
    %683 = vmatprep.subr.mxu0 0.0
    %684 = vmatpush1.msra.mxu0 0.0
    %685 = vmatprep.subr.mxu0 0.0
    %686 = vmatpush1.msra.mxu0 0.0
    %687 = vmatprep.subr.mxu0 0.0
    %688 = vmatpush1.msra.mxu0 0.0
    %689 = vmatprep.subr.mxu0 0.0
    %690 = vmatpush1.msra.mxu0 0.0
    %691 = vmatprep.subr.mxu0 0.0
    %692 = vmatpush1.msra.mxu0 0.0
    %693 = vmatprep.subr.mxu0 0.0
    %694 = vmatpush1.msra.mxu0 0.0
    %695 = vmatprep.subr.mxu0 0.0
    %696 = vmatpush1.msra.mxu0 0.0
    %697 = vmatprep.subr.mxu0 0.0
    %698 = vmatpush1.msra.mxu0 0.0
    %699 = vmatprep.subr.mxu0 0.0
    %700 = vmatpush1.msra.mxu0 0.0
    %701 = vmatprep.subr.mxu0 0.0
    %702 = vmatpush1.msra.mxu0 0.0
    %703 = vmatprep.subr.mxu0 0.0
    %704 = vmatpush1.msra.mxu0 0.0
    %705 = vmatprep.subr.mxu0 0.0
    %706 = vmatpush1.msra.mxu0 0.0
    %707 = vmatprep.subr.mxu0 0.0
    %708 = vmatpush1.msra.mxu0 0.0
    %709 = vmatprep.subr.mxu0 0.0
    %710 = vmatpush1.msra.mxu0 0.0
    %711 = vmatprep.subr.mxu0 0.0
    %712 = vmatpush1.msra.mxu0 0.0
    %713 = vmatprep.mubr.f32.mxu0 0.0
    %714 = vmatmul.mubr.f32.gmra.mrb[0].mxu0 %v647
    %v715 = vpop.f32.mrb[0].mxu0
    %v716 = vadd.f32 0.0, %v715
    %v717 = vpop.f32.mrb[0].mxu0
    %718 = vdwg.mxu0
    %v719 = vadd.f32 %v646, %v716
    %v720 = vxor.u32 %v719, 2147483648
    %v721 = vmul.f32 %v720, 1.442695
    %v722 = vpow.pop %v721
    %v723 = vadd.f32 %v722, 1.0
    %v724 = vrcp.pop %v723
    %v725 = vmul.f32 1.0, %v724
    %v726 = vmul.f32 %v725, 2.0
    %v727 = vsub.f32 %v726, 1.0
    %v728 = vmul.f32 %v725, %v632
    %730 = vrot.lane.b32.xlu0 %v727, 64
    %v731 = vpop.permute.xlu0 %730
    %v733 = vmul.f32 %v725, %v731
    %735 = vrot.lane.b32.xlu0 %v733, 32
    %v736 = vpop.permute.xlu0 %735
    %v738 = vadd.f32 %v728, %v736
    %v739 = vtanh.pop %v738
    %741 = vrot.lane.b32.xlu0 %v739, 64
    %v742 = vpop.permute.xlu0 %741
    %v744 = vmul.f32 %v725, %v742
    %746 = vrot.lane.b32.xlu0 %v744, 32
    %v747 = vpop.permute.xlu0 %746
    %s749 = scalar_lea.vmem [#allocation3], 40
    %750 = vst.msk [vmem:[%s749] sm:$0xff] %vm116, %v747
    %s751 = scalar_lea.vmem [#allocation2], 48
    %v752 = vld [vmem:[%s751] sm:$0xff]
    %v753 = vsel %vm116, %v747, 0
    %755 = vmatprep.subr.mxu0 0.0
    %756 = vmatpush1.msra.mxu0 %v111
    %757 = vmatprep.subr.mxu0 0.0
    %758 = vmatpush1.msra.mxu0 %v112
    %759 = vmatprep.subr.mxu0 0.0
    %760 = vmatpush1.msra.mxu0 %v113
    %761 = vmatprep.subr.mxu0 0.0
    %762 = vmatpush1.msra.mxu0 %v114
    %763 = vmatprep.subr.mxu0 0.0
    %764 = vmatpush1.msra.mxu0 0.0
    %765 = vmatprep.subr.mxu0 0.0
    %766 = vmatpush1.msra.mxu0 0.0
    %767 = vmatprep.subr.mxu0 0.0
    %768 = vmatpush1.msra.mxu0 0.0
    %769 = vmatprep.subr.mxu0 0.0
    %770 = vmatpush1.msra.mxu0 0.0
    %771 = vmatprep.subr.mxu0 0.0
    %772 = vmatpush1.msra.mxu0 0.0
    %773 = vmatprep.subr.mxu0 0.0
    %774 = vmatpush1.msra.mxu0 0.0
    %775 = vmatprep.subr.mxu0 0.0
    %776 = vmatpush1.msra.mxu0 0.0
    %777 = vmatprep.subr.mxu0 0.0
    %778 = vmatpush1.msra.mxu0 0.0
    %779 = vmatprep.subr.mxu0 0.0
    %780 = vmatpush1.msra.mxu0 0.0
    %781 = vmatprep.subr.mxu0 0.0
    %782 = vmatpush1.msra.mxu0 0.0
    %783 = vmatprep.subr.mxu0 0.0
    %784 = vmatpush1.msra.mxu0 0.0
    %785 = vmatprep.subr.mxu0 0.0
    %786 = vmatpush1.msra.mxu0 0.0
    %787 = vmatprep.subr.mxu0 0.0
    %788 = vmatpush1.msra.mxu0 0.0
    %789 = vmatprep.subr.mxu0 0.0
    %790 = vmatpush1.msra.mxu0 0.0
    %791 = vmatprep.subr.mxu0 0.0
    %792 = vmatpush1.msra.mxu0 0.0
    %793 = vmatprep.subr.mxu0 0.0
    %794 = vmatpush1.msra.mxu0 0.0
    %795 = vmatprep.subr.mxu0 0.0
    %796 = vmatpush1.msra.mxu0 0.0
    %797 = vmatprep.subr.mxu0 0.0
    %798 = vmatpush1.msra.mxu0 0.0
    %799 = vmatprep.subr.mxu0 0.0
    %800 = vmatpush1.msra.mxu0 0.0
    %801 = vmatprep.subr.mxu0 0.0
    %802 = vmatpush1.msra.mxu0 0.0
    %803 = vmatprep.subr.mxu0 0.0
    %804 = vmatpush1.msra.mxu0 0.0
    %805 = vmatprep.subr.mxu0 0.0
    %806 = vmatpush1.msra.mxu0 0.0
    %807 = vmatprep.subr.mxu0 0.0
    %808 = vmatpush1.msra.mxu0 0.0
    %809 = vmatprep.subr.mxu0 0.0
    %810 = vmatpush1.msra.mxu0 0.0
    %811 = vmatprep.subr.mxu0 0.0
    %812 = vmatpush1.msra.mxu0 0.0
    %813 = vmatprep.subr.mxu0 0.0
    %814 = vmatpush1.msra.mxu0 0.0
    %815 = vmatprep.subr.mxu0 0.0
    %816 = vmatpush1.msra.mxu0 0.0
    %817 = vmatprep.subr.mxu0 0.0
    %818 = vmatpush1.msra.mxu0 0.0
    %819 = vmatprep.mubr.f32.mxu0 0.0
    %820 = vmatmul.mubr.f32.gmra.mrb[0].mxu0 %v753
    %v821 = vpop.f32.mrb[0].mxu0
    %v822 = vadd.f32 0.0, %v821
    %v823 = vpop.f32.mrb[0].mxu0
    %824 = vdwg.mxu0
    %v825 = vadd.f32 %v752, %v822
    %v826 = vxor.u32 %v825, 2147483648
    %v827 = vmul.f32 %v826, 1.442695
    %v828 = vpow.pop %v827
    %v829 = vadd.f32 %v828, 1.0
    %v830 = vrcp.pop %v829
    %v831 = vmul.f32 1.0, %v830
    %v832 = vmul.f32 %v831, 2.0
    %v833 = vsub.f32 %v832, 1.0
    %v834 = vmul.f32 %v831, %v738
    %836 = vrot.lane.b32.xlu0 %v833, 64
    %v837 = vpop.permute.xlu0 %836
    %v839 = vmul.f32 %v831, %v837
    %841 = vrot.lane.b32.xlu0 %v839, 32
    %v842 = vpop.permute.xlu0 %841
    %v844 = vadd.f32 %v834, %v842
    %v845 = vtanh.pop %v844
    %847 = vrot.lane.b32.xlu0 %v845, 64
    %v848 = vpop.permute.xlu0 %847
    %v850 = vmul.f32 %v831, %v848
    %852 = vrot.lane.b32.xlu0 %v850, 32
    %v853 = vpop.permute.xlu0 %852
    %s855 = scalar_lea.vmem [#allocation3], 48
    %856 = vst.msk [vmem:[%s855] sm:$0xff] %vm116, %v853
    %s857 = scalar_lea.vmem [#allocation2], 56
    %v858 = vld [vmem:[%s857] sm:$0xff]
    %v859 = vsel %vm116, %v853, 0
    %861 = vmatprep.subr.mxu0 0.0
    %862 = vmatpush1.msra.mxu0 %v111
    %863 = vmatprep.subr.mxu0 0.0
    %864 = vmatpush1.msra.mxu0 %v112
    %865 = vmatprep.subr.mxu0 0.0
    %866 = vmatpush1.msra.mxu0 %v113
    %867 = vmatprep.subr.mxu0 0.0
    %868 = vmatpush1.msra.mxu0 %v114
    %869 = vmatprep.subr.mxu0 0.0
    %870 = vmatpush1.msra.mxu0 0.0
    %871 = vmatprep.subr.mxu0 0.0
    %872 = vmatpush1.msra.mxu0 0.0
    %873 = vmatprep.subr.mxu0 0.0
    %874 = vmatpush1.msra.mxu0 0.0
    %875 = vmatprep.subr.mxu0 0.0
    %876 = vmatpush1.msra.mxu0 0.0
    %877 = vmatprep.subr.mxu0 0.0
    %878 = vmatpush1.msra.mxu0 0.0
    %879 = vmatprep.subr.mxu0 0.0
    %880 = vmatpush1.msra.mxu0 0.0
    %881 = vmatprep.subr.mxu0 0.0
    %882 = vmatpush1.msra.mxu0 0.0
    %883 = vmatprep.subr.mxu0 0.0
    %884 = vmatpush1.msra.mxu0 0.0
    %885 = vmatprep.subr.mxu0 0.0
    %886 = vmatpush1.msra.mxu0 0.0
    %887 = vmatprep.subr.mxu0 0.0
    %888 = vmatpush1.msra.mxu0 0.0
    %889 = vmatprep.subr.mxu0 0.0
    %890 = vmatpush1.msra.mxu0 0.0
    %891 = vmatprep.subr.mxu0 0.0
    %892 = vmatpush1.msra.mxu0 0.0
    %893 = vmatprep.subr.mxu0 0.0
    %894 = vmatpush1.msra.mxu0 0.0
    %895 = vmatprep.subr.mxu0 0.0
    %896 = vmatpush1.msra.mxu0 0.0
    %897 = vmatprep.subr.mxu0 0.0
    %898 = vmatpush1.msra.mxu0 0.0
    %899 = vmatprep.subr.mxu0 0.0
    %900 = vmatpush1.msra.mxu0 0.0
    %901 = vmatprep.subr.mxu0 0.0
    %902 = vmatpush1.msra.mxu0 0.0
    %903 = vmatprep.subr.mxu0 0.0
    %904 = vmatpush1.msra.mxu0 0.0
    %905 = vmatprep.subr.mxu0 0.0
    %906 = vmatpush1.msra.mxu0 0.0
    %907 = vmatprep.subr.mxu0 0.0
    %908 = vmatpush1.msra.mxu0 0.0
    %909 = vmatprep.subr.mxu0 0.0
    %910 = vmatpush1.msra.mxu0 0.0
    %911 = vmatprep.subr.mxu0 0.0
    %912 = vmatpush1.msra.mxu0 0.0
    %913 = vmatprep.subr.mxu0 0.0
    %914 = vmatpush1.msra.mxu0 0.0
    %915 = vmatprep.subr.mxu0 0.0
    %916 = vmatpush1.msra.mxu0 0.0
    %917 = vmatprep.subr.mxu0 0.0
    %918 = vmatpush1.msra.mxu0 0.0
    %919 = vmatprep.subr.mxu0 0.0
    %920 = vmatpush1.msra.mxu0 0.0
    %921 = vmatprep.subr.mxu0 0.0
    %922 = vmatpush1.msra.mxu0 0.0
    %923 = vmatprep.subr.mxu0 0.0
    %924 = vmatpush1.msra.mxu0 0.0
    %925 = vmatprep.mubr.f32.mxu0 0.0
    %926 = vmatmul.mubr.f32.gmra.mrb[0].mxu0 %v859
    %v927 = vpop.f32.mrb[0].mxu0
    %v928 = vadd.f32 0.0, %v927
    %v929 = vpop.f32.mrb[0].mxu0
    %930 = vdwg.mxu0
    %v931 = vadd.f32 %v858, %v928
    %v932 = vxor.u32 %v931, 2147483648
    %v933 = vmul.f32 %v932, 1.442695
    %v934 = vpow.pop %v933
    %v935 = vadd.f32 %v934, 1.0
    %v936 = vrcp.pop %v935
    %v937 = vmul.f32 1.0, %v936
    %v938 = vmul.f32 %v937, 2.0
    %v939 = vsub.f32 %v938, 1.0
    %v940 = vmul.f32 %v937, %v844
    %942 = vrot.lane.b32.xlu0 %v939, 64
    %v943 = vpop.permute.xlu0 %942
    %v945 = vmul.f32 %v937, %v943
    %947 = vrot.lane.b32.xlu0 %v945, 32
    %v948 = vpop.permute.xlu0 %947
    %v950 = vadd.f32 %v940, %v948
    %v951 = vtanh.pop %v950
    %953 = vrot.lane.b32.xlu0 %v951, 64
    %v954 = vpop.permute.xlu0 %953
    %v956 = vmul.f32 %v937, %v954
    %958 = vrot.lane.b32.xlu0 %v956, 32
    %v959 = vpop.permute.xlu0 %958
    %s961 = scalar_lea.vmem [#allocation3], 56
    %962 = vst.msk [vmem:[%s961] sm:$0xff] %vm116, %v959
    %v963 = vld [vmem:[#allocation3] sm:$0xff]
    %v964 = vld [vmem:[#allocation3 + $0x8] sm:$0xff]
    %v965 = vld [vmem:[#allocation3 + $0x10] sm:$0xff]
    %v966 = vld [vmem:[#allocation3 + $0x18] sm:$0xff]
    %v967 = vld [vmem:[#allocation3 + $0x20] sm:$0xff]
    %v968 = vld [vmem:[#allocation3 + $0x28] sm:$0xff]
    %v969 = vld [vmem:[#allocation3 + $0x30] sm:$0xff]
    %v970 = vld [vmem:[#allocation3 + $0x38] sm:$0xff]
    %v971 = vld [vmem:[%s4] sm:$0x1]
    %v973 = vlaneseq
    %v974 = vshrl.u32 %v973, 7
    %v975 = vsub.s32 0, %v974
    %v976 = vrot.slane %v971, %v975
    %v978 = vmul.f32 %v963, %v976
    %v979 = vmul.f32 %v964, %v976
    %v980 = vmul.f32 %v965, %v976
    %v981 = vmul.f32 %v966, %v976
    %v982 = vmul.f32 %v967, %v976
    %v983 = vmul.f32 %v968, %v976
    %v984 = vmul.f32 %v969, %v976
    %v985 = vmul.f32 %v970, %v976
    %v986 = vsel %vm116, %v978, 0.0
    %987 = vadd.xlane.f32.xlu0 %v986
    %v988 = vpop.xlane.xlu0 %987
    %v989 = vsel %vm116, %v979, 0.0
    %990 = vadd.xlane.f32.xlu0 %v989
    %v991 = vpop.xlane.xlu0 %990
    %v992 = vsel %vm116, %v980, 0.0
    %993 = vadd.xlane.f32.xlu0 %v992
    %v994 = vpop.xlane.xlu0 %993
    %v995 = vsel %vm116, %v981, 0.0
    %996 = vadd.xlane.f32.xlu0 %v995
    %v997 = vpop.xlane.xlu0 %996
    %v998 = vsel %vm116, %v982, 0.0
    %999 = vadd.xlane.f32.xlu0 %v998
    %v1000 = vpop.xlane.xlu0 %999
    %v1001 = vsel %vm116, %v983, 0.0
    %1002 = vadd.xlane.f32.xlu0 %v1001
    %v1003 = vpop.xlane.xlu0 %1002
    %v1004 = vsel %vm116, %v984, 0.0
    %1005 = vadd.xlane.f32.xlu0 %v1004
    %v1006 = vpop.xlane.xlu0 %1005
    %v1007 = vsel %vm116, %v985, 0.0
    %1008 = vadd.xlane.f32.xlu0 %v1007
    %v1009 = vpop.xlane.xlu0 %1008
    %s1010 = sld [smem:[#allocation4]]
    %v1011 = vstv %s1010
    %v1012 = vadd.f32 %v988, %v1011
    %v1013 = vadd.f32 %v991, %v1011
    %v1014 = vadd.f32 %v994, %v1011
    %v1015 = vadd.f32 %v997, %v1011
    %v1016 = vadd.f32 %v1000, %v1011
    %v1017 = vadd.f32 %v1003, %v1011
    %v1018 = vadd.f32 %v1006, %v1011
    %v1019 = vadd.f32 %v1009, %v1011
    %v1028 = vlaneseq
    %v1029 = vand.u32 %v1028, 127
    %v1030 = vlaneseq
    %v1031 = vshrl.u32 %v1030, 7
    %v1032 = vsub.s32 %v1029, %v1031
    %v1033 = vrot.slane %v1012, %v1032
    %v1034 = vlaneseq
    %v1035 = vshrl.u32 %v1034, 7
    %v1036 = vsub.s32 %v1029, %v1035
    %v1037 = vrot.slane %v1013, %v1036
    %v1038 = vlaneseq
    %v1039 = vshrl.u32 %v1038, 7
    %v1040 = vsub.s32 %v1029, %v1039
    %v1041 = vrot.slane %v1014, %v1040
    %v1042 = vlaneseq
    %v1043 = vshrl.u32 %v1042, 7
    %v1044 = vsub.s32 %v1029, %v1043
    %v1045 = vrot.slane %v1015, %v1044
    %v1046 = vlaneseq
    %v1047 = vshrl.u32 %v1046, 7
    %v1048 = vsub.s32 %v1029, %v1047
    %v1049 = vrot.slane %v1016, %v1048
    %v1050 = vlaneseq
    %v1051 = vshrl.u32 %v1050, 7
    %v1052 = vsub.s32 %v1029, %v1051
    %v1053 = vrot.slane %v1017, %v1052
    %v1054 = vlaneseq
    %v1055 = vshrl.u32 %v1054, 7
    %v1056 = vsub.s32 %v1029, %v1055
    %v1057 = vrot.slane %v1018, %v1056
    %v1058 = vlaneseq
    %v1059 = vshrl.u32 %v1058, 7
    %v1060 = vsub.s32 %v1029, %v1059
    %v1061 = vrot.slane %v1019, %v1060
    %vm1062 = vcmask 1041409
    %v1063 = vsel %vm1062, %v1037, %v1033
    %vm1064 = vcmask 1042434
    %v1065 = vsel %vm1064, %v1041, %v1063
    %vm1066 = vcmask 1043459
    %v1067 = vsel %vm1066, %v1045, %v1065
    %vm1068 = vcmask 1044484
    %v1069 = vsel %vm1068, %v1049, %v1067
    %vm1070 = vcmask 1045509
    %v1071 = vsel %vm1070, %v1053, %v1069
    %vm1072 = vcmask 1046534
    %v1073 = vsel %vm1072, %v1057, %v1071
    %vm1074 = vcmask 1047559
    %v1075 = vsel %vm1074, %v1061, %v1073
    %vm1077 = vcmask 64512
    %1078 = vst.msk [vmem:[#allocation5] sm:$0xff] %vm1077, %v1075
    // Predicated region
    $region26: #{net_forward.1} parent=1 // pred_check
      _
    $region27: #{net_forward.1} parent=1 // pred_check_branch
      %1080 = sbr.rel (0) target = $region29
    $region28: #{net_forward.1} parent=1 // pred_region
      %s1082 = ssub.s32 128, 128
      %1083 = vsyncadd [#allocation6], %s1082
      %s1085 = sshll.u32 [#allocation5], 4
      %s1086 = int_to_ptr.vmem [resolvable:$true] %s1085
      %1088 = dma.vmem_to_hbm [thread:$0]  %s1086, 128, %s6, [#allocation6]
    $region29: #{net_forward.1} parent=1 // pred_fallthru
      _
    // Predicated region
    $region30: #{net_forward.1} parent=1 // pred_check
      _
    $region31: #{net_forward.1} parent=1 // pred_check_branch
      %1090 = sbr.rel (0) target = $region33
    $region32: #{net_forward.1} parent=1 // pred_region
      %1091 = dma.done [#allocation6], 128
    $region33: #{net_forward.1} parent=1 // pred_fallthru
      _
    %1092 = vsyncpa [#allocation6], 1

</llo_original>
